<compile_context>
chip_gen: v5e
topology: v5e:2x2
jax: 0.10.0
libtpu: 0.0.40
codegen_flags: <defaults>
</compile_context>

<pallas_src>
import math
from functools import partial

import jax
import jax.numpy as jnp
from jax import lax
from jax.experimental import pallas as pl
from jax.experimental.pallas import tpu as pltpu


# --------------------------------------------------------------------------
# Kernel 1: generic tiled linear  y = x @ W + b   (used for fused QKV and out proj)
# --------------------------------------------------------------------------
def _linear_kernel(x_ref, w_ref, b_ref, o_ref):
    o_ref[...] = (jnp.dot(x_ref[...], w_ref[...],
                          preferred_element_type=jnp.float32)
                  + b_ref[...]).astype(o_ref.dtype)


def linear(x2d, w, b, *, tm=128, tn=512):
    """x2d: (M, K), w: (K, N), b: (1, N) -> (M, N)."""
    M, K = x2d.shape
    N = w.shape[1]
    tm = min(tm, M)
    tn = min(tn, N)
    grid = (pl.cdiv(M, tm), pl.cdiv(N, tn))
    return pl.pallas_call(
        _linear_kernel,
        grid=grid,
        in_specs=[pl.BlockSpec((tm, K), lambda i, j: (i, 0)),
                  pl.BlockSpec((K, tn), lambda i, j: (0, j)),
                  pl.BlockSpec((1, tn), lambda i, j: (0, j))],
        out_specs=pl.BlockSpec((tm, tn), lambda i, j: (i, j)),
        out_shape=jax.ShapeDtypeStruct((M, N), jnp.float32),
        compiler_params=pltpu.CompilerParams(
            dimension_semantics=("parallel", "parallel")),
    )(x2d, w, b)


# --------------------------------------------------------------------------
# Kernel 2: multi-head attention, grid over (batch, head, kv-tile),
#           online softmax over the (masked) KV length.
# --------------------------------------------------------------------------
def _mha_kernel(kvlen_ref, q_ref, k_ref, v_ref, o_ref,
                m_sc, l_sc, acc_sc, *, scale, tk):
    l_idx = pl.program_id(2)

    @pl.when(l_idx == 0)
    def _():
        m_sc[...] = jnp.full_like(m_sc, -jnp.inf)
        l_sc[...] = jnp.zeros_like(l_sc)
        acc_sc[...] = jnp.zeros_like(acc_sc)

    kv_len = kvlen_ref[0]
    tile_start = l_idx * tk

    @pl.when(tile_start < kv_len)          # skip compute on fully-invalid cache tiles
    def _():
        q = q_ref[0, 0]                    # (S, hd)
        k = k_ref[0, 0]                    # (tk, hd)
        v = v_ref[0, 0]                    # (tk, hd)
        # contract last dims of q and k directly (no explicit transpose relayout)
        s = lax.dot_general(q, k, (((1,), (1,)), ((), ())),
                            preferred_element_type=jnp.float32) * scale   # (S, tk)
        col = tile_start + lax.broadcasted_iota(jnp.int32, s.shape, 1)
        s = jnp.where(col < kv_len, s, -1e30)

        m_prev = m_sc[...]
        m_new = jnp.maximum(m_prev, jnp.max(s, axis=-1, keepdims=True))
        alpha = jnp.exp(m_prev - m_new)
        p = jnp.exp(s - m_new)
        l_sc[...] = alpha * l_sc[...] + jnp.sum(p, axis=-1, keepdims=True)
        acc_sc[...] = alpha * acc_sc[...] + jnp.dot(
            p.astype(v.dtype), v, preferred_element_type=jnp.float32)
        m_sc[...] = m_new

    @pl.when(l_idx == pl.num_programs(2) - 1)
    def _():
        o_ref[0, 0] = (acc_sc[...] *
                       pl.reciprocal(l_sc[...], approx=True)).astype(o_ref.dtype)


def mha(q, k, v, kv_len, *, kv_tile=128):
    """q: (B,H,S,hd); k,v: (B,H,L,hd) (L >= kv_len, padded cache ok) -> (B,H,S,hd)."""
    B, H, S, hd = q.shape
    L = k.shape[2]
    tk = min(kv_tile, L)
    scale = 1.0 / math.sqrt(hd)
    kv_len_arr = jnp.asarray([kv_len], jnp.int32)
    grid = (B, H, pl.cdiv(L, tk))
    return pl.pallas_call(
        partial(_mha_kernel, scale=scale, tk=tk),
        grid_spec=pltpu.PrefetchScalarGridSpec(
            num_scalar_prefetch=1,
            grid=grid,
            in_specs=[pl.BlockSpec((1, 1, S, hd), lambda b, h, l, kvlen: (b, h, 0, 0)),
                      pl.BlockSpec((1, 1, tk, hd), lambda b, h, l, kvlen: (b, h, l, 0)),
                      pl.BlockSpec((1, 1, tk, hd), lambda b, h, l, kvlen: (b, h, l, 0))],
            out_specs=pl.BlockSpec((1, 1, S, hd), lambda b, h, l, kvlen: (b, h, 0, 0)),
            scratch_shapes=[pltpu.VMEM((S, 1), jnp.float32),
                            pltpu.VMEM((S, 1), jnp.float32),
                            pltpu.VMEM((S, hd), jnp.float32)]),
        out_shape=jax.ShapeDtypeStruct((B, H, S, hd), q.dtype),
        compiler_params=pltpu.CompilerParams(
            dimension_semantics=("parallel", "parallel", "arbitrary")),
    )(kv_len_arr, q, k, v)


# --------------------------------------------------------------------------
# Module-equivalent wrapper (functional, preallocated in-place KV cache)
# --------------------------------------------------------------------------
def init_params(key, embed_dim):
    ks = jax.random.split(key, 8)
    bound = 1.0 / math.sqrt(embed_dim)
    u = lambda k, shape: jax.random.uniform(k, shape, jnp.float32, -bound, bound)
    wq, wk, wv = u(ks[0], (embed_dim, embed_dim)), u(ks[1], (embed_dim, embed_dim)), u(ks[2], (embed_dim, embed_dim))
    bq, bk, bv = u(ks[3], (1, embed_dim)), u(ks[4], (1, embed_dim)), u(ks[5], (1, embed_dim))
    return {
        "w_qkv": jnp.concatenate([wq, wk, wv], axis=1),   # (E, 3E) fused projection
        "b_qkv": jnp.concatenate([bq, bk, bv], axis=1),   # (1, 3E)
        "wo": u(ks[6], (embed_dim, embed_dim)),
        "bo": u(ks[7], (1, embed_dim)),
    }


def init_cache(batch, num_heads, head_dim, max_len, dtype=jnp.float32):
    max_len = -(-max_len // 8) * 8          # round capacity up to a sublane multiple
    z = jnp.zeros((batch, num_heads, max_len, head_dim), dtype)
    return {"k": z, "v": z, "pos": 0}


def _to_heads(x, num_heads):                # (B, S, E) -> (B, H, S, hd)
    B, S, E = x.shape
    return x.reshape(B, S, num_heads, E // num_heads).transpose(0, 2, 1, 3)


def _from_heads(x):                         # (B, H, S, hd) -> (B, S, E)
    B, H, S, hd = x.shape
    return x.transpose(0, 2, 1, 3).reshape(B, S, H * hd)


def cached_self_attention(params, x, num_heads, cache=None, use_cache=False, kv_tile=128):
    """Mirrors CachedSelfAttention.forward. Returns (out, new_cache)."""
    B, S, E = x.shape
    hd = E // num_heads

    # Fused QKV projection over flattened (B*S) rows.
    qkv = linear(x.reshape(B * S, E), params["w_qkv"], params["b_qkv"]).reshape(B, S, 3 * E)
    q, k, v = qkv[..., :E], qkv[..., E:2 * E], qkv[..., 2 * E:]
    qh, kh, vh = _to_heads(q, num_heads), _to_heads(k, num_heads), _to_heads(v, num_heads)

    if use_cache:
        if cache is None:
            raise ValueError("pass a preallocated cache (init_cache) when use_cache=True")
        pos = cache["pos"]
        if isinstance(pos, int):
            assert pos + S <= cache["k"].shape[2], "cache capacity exceeded"
        k_all = lax.dynamic_update_slice_in_dim(cache["k"], kh, pos, axis=2)
        v_all = lax.dynamic_update_slice_in_dim(cache["v"], vh, pos, axis=2)
        kv_len = pos + S
        new_cache = {"k": k_all, "v": v_all, "pos": kv_len}
        k_use, v_use = k_all, v_all
    else:
        new_cache = None
        kv_len = S
        k_use, v_use = kh, vh

    ctx = mha(qh, k_use, v_use, kv_len, kv_tile=kv_tile)    # (B, H, S, hd)
    ctx = _from_heads(ctx)                                  # (B, S, E)
    out = linear(ctx.reshape(B * S, E), params["wo"], params["bo"]).reshape(B, S, E)
    return out, new_cache


# --------------------------------------------------------------------------
# Pure-JAX reference (functional concat cache, like the PyTorch module)
# --------------------------------------------------------------------------
def reference(params, x, num_heads, kv_prev=None):
    B, S, E = x.shape
    hd = E // num_heads
    qkv = x @ params["w_qkv"] + params["b_qkv"]
    q, k, v = qkv[..., :E], qkv[..., E:2 * E], qkv[..., 2 * E:]
    if kv_prev is not None:
        k = jnp.concatenate([kv_prev[0], k], axis=1)
        v = jnp.concatenate([kv_prev[1], v], axis=1)
    L = k.shape[1]
    qh = q.reshape(B, S, num_heads, hd).transpose(0, 2, 1, 3)
    kh = k.reshape(B, L, num_heads, hd).transpose(0, 2, 1, 3)
    vh = v.reshape(B, L, num_heads, hd).transpose(0, 2, 1, 3)
    s = jnp.einsum("bhqd,bhkd->bhqk", qh, kh) / math.sqrt(hd)
    p = jax.nn.softmax(s, axis=-1)
    o = jnp.einsum("bhqk,bhkd->bhqd", p, vh)
    o = o.transpose(0, 2, 1, 3).reshape(B, S, E)
    return o @ params["wo"] + params["bo"], (k, v)


if __name__ == "__main__":
    B, S, E, H = 2, 8, 32, 4
    hd = E // H
    key = jax.random.PRNGKey(0)
    kp, kx1, kx2 = jax.random.split(key, 3)
    params = init_params(kp, E)
    x1 = jax.random.normal(kx1, (B, S, E), jnp.float32)
    x2 = jax.random.normal(kx2, (B, S, E), jnp.float32)

    # Path 1: no cache.
    out0, _ = cached_self_attention(params, x1, H, use_cache=False)

    # Path 2: preallocated in-place cache, two steps (kv_tile=16 -> exercises tile
    # masking on step 1 and multi-tile online softmax on step 2).
    cache = init_cache(B, H, hd, max_len=4 * S)
    out1, cache = cached_self_attention(params, x1, H, cache=cache, use_cache=True, kv_tile=16)
    out2, cache = cached_self_attention(params, x2, H, cache=cache, use_cache=True, kv_tile=16)
    jax.block_until_ready((out0, out1, out2))

    ref0, _ = reference(params, x1, H, kv_prev=None)
    ref1, kv = reference(params, x1, H, kv_prev=None)
    ref2, _ = reference(params, x2, H, kv_prev=kv)

    assert jnp.allclose(out0, ref0, atol=2e-3, rtol=2e-3)
    assert jnp.allclose(out1, ref1, atol=2e-3, rtol=2e-3)
    assert jnp.allclose(out2, ref2, atol=2e-3, rtol=2e-3)
    print("KERNEL_OK")
</pallas_src>

<mosaic_0001>
module attributes {stable_mosaic.version = 11 : i64} {
  func.func @_linear_kernel(%arg0: i32, %arg1: i32, %arg2: memref<16x32xf32, #tpu.memory_space<vmem>>, %arg3: memref<32x96xf32, #tpu.memory_space<vmem>>, %arg4: memref<1x96xf32, #tpu.memory_space<vmem>>, %arg5: memref<16x96xf32, #tpu.memory_space<vmem>>) attributes {dimension_semantics = [#tpu.dimension_semantics<parallel>, #tpu.dimension_semantics<parallel>], iteration_bounds = array<i64: 1, 1>, scalar_prefetch = 0 : i64, scratch_operands = 0 : i64, tpu.core_type = #tpu.core_type<tc>, window_params = [{transform_indices = @transform_0, window_bounds = array<i64: 16, 32>}, {transform_indices = @transform_1, window_bounds = array<i64: 32, 96>}, {transform_indices = @transform_2, window_bounds = array<i64: 1, 96>}, {transform_indices = @transform_3, window_bounds = array<i64: 16, 96>}]} {
    %c0 = arith.constant 0 : index
    %c0_0 = arith.constant 0 : index
    %0 = vector.load %arg2[%c0, %c0_0] : memref<16x32xf32, #tpu.memory_space<vmem>>, vector<16x32xf32>
    %c0_1 = arith.constant 0 : index
    %c0_2 = arith.constant 0 : index
    %1 = vector.load %arg3[%c0_1, %c0_2] : memref<32x96xf32, #tpu.memory_space<vmem>>, vector<32x96xf32>
    %cst = arith.constant dense<0.000000e+00> : vector<16x96xf32>
    %2 = tpu.matmul %0, %1, %cst {dimension_numbers = #tpu.dot_dimension_numbers<[1], [0], [0], [1], [0, 0, 1, 1], [], []>} : vector<16x32xf32>, vector<32x96xf32>, vector<16x96xf32> -> vector<16x96xf32>
    %c0_3 = arith.constant 0 : index
    %c0_4 = arith.constant 0 : index
    %3 = vector.load %arg4[%c0_3, %c0_4] : memref<1x96xf32, #tpu.memory_space<vmem>>, vector<1x96xf32>
    %4 = vector.broadcast %3 : vector<1x96xf32> to vector<16x96xf32>
    %5 = arith.addf %2, %4 : vector<16x96xf32>
    %c0_5 = arith.constant 0 : index
    %c0_6 = arith.constant 0 : index
    %6 = vector.load %arg5[%c0_5, %c0_6] : memref<16x96xf32, #tpu.memory_space<vmem>>, vector<16x96xf32>
    tpu.vector_store %arg5[%c0_5, %c0_6], %5 {strides = array<i32>} : memref<16x96xf32, #tpu.memory_space<vmem>>, vector<16x96xf32>,
    return
  }
  func.func @transform_0(%arg0: i32, %arg1: i32) -> (i32, i32) {
    %c0_i32 = arith.constant 0 : i32
    %c0_i32_0 = arith.constant 0 : i32
    return %arg0, %c0_i32 : i32, i32
  }
  func.func @transform_1(%arg0: i32, %arg1: i32) -> (i32, i32) {
    %c0_i32 = arith.constant 0 : i32
    %c0_i32_0 = arith.constant 0 : i32
    return %c0_i32, %arg1 : i32, i32
  }
  func.func @transform_2(%arg0: i32, %arg1: i32) -> (i32, i32) {
    %c0_i32 = arith.constant 0 : i32
    %c0_i32_0 = arith.constant 0 : i32
    return %c0_i32, %arg1 : i32, i32
  }
  func.func @transform_3(%arg0: i32, %arg1: i32) -> (i32, i32) {
    %c0_i32 = arith.constant 0 : i32
    return %arg0, %arg1 : i32, i32
  }
}

</mosaic_0001>

<llo_original>
// kernel: tpu_custom_call.1
$region0: #{tpu_custom_call.1}
  #allocation0 [shape = 'u32[]', space=smem, size = 0x4, offset = 0x4, fixed_abs, tag = 'smem constant byte address 0x4 - core index']
  #allocation1 [shape = 'u32[72,128]{1,0:T(1,128)}', space=vmem, size = 0x9000, scoped, tag = 'internal scratch']
  %s0 = inlined_call_operand.hbm [shape: f32[16,32], index: 0, kind: input, shape index: {}]
  %s1 = inlined_call_operand.hbm [shape: f32[32,96], index: 1, kind: input, shape index: {}]
  %s2 = inlined_call_operand.vmem [shape: f32[1,96], index: 2, kind: input, shape index: {}]
  %s3 = inlined_call_operand.hbm [shape: f32[16,96], index: 3, kind: output, shape index: {}]
  %s4 = sld [smem:[#allocation0]]
  $region30: #{tpu_custom_call.1} parent=0
    _
  %s6 = ssub.s32 1, %s4
  %s7 = scalar_select 0, %s6, %s4
  $region1: #{tpu_custom_call.1} parent=0
    #allocation2 [shape = 'u8[8192]{0}', space=vmem, size = 0x2000, scoped, tag = 'input window, operand 0, single buffered']
    #allocation3 [shape = 's32[1]{0}', space=sflag, size = 0x4, scoped, tag = 'scoped memory for tpu_custom_call.1']
    #allocation4 [shape = 's32[1]{0}', space=sflag, size = 0x4, scoped, tag = 'scoped memory for tpu_custom_call.1']
    #allocation5 [shape = 'u8[16384]{0}', space=vmem, size = 0x4000, scoped, tag = 'input window, operand 1, single buffered']
    #allocation6 [shape = 's32[1]{0}', space=sflag, size = 0x4, scoped, tag = 'scoped memory for tpu_custom_call.1']
    #allocation7 [shape = 'u8[8192]{0}', space=vmem, size = 0x2000, scoped, tag = 'output window, operand 0, single buffered']
    %8 = vsyncpa [#allocation3], 0
    %9 = vsyncpa [#allocation6], 0
    %10 = vsyncpa [#allocation4], 0
    // Predicated region
    $region2: #{tpu_custom_call.1} parent=1 // pred_check
      _
    $region3: #{tpu_custom_call.1} parent=1 // pred_check_branch
      %12 = sbr.rel (0) target = $region5
    $region4: #{tpu_custom_call.1} parent=1 // pred_region
      %14 = vsyncadd [#allocation3], 0
      %s15 = sshll.u32 %s0, 4
      %s16 = int_to_ptr.hbm [resolvable:$true] %s15
      %s17 = sshll.u32 [#allocation2], 4
      %s18 = int_to_ptr.vmem [resolvable:$true] %s17
      %23 = dma.hbm_to_vmem [thread:$0]  %s16, 256, %s18, [#allocation3], 128, 128, 8
    $region5: #{tpu_custom_call.1} parent=1 // pred_fallthru
      _
    // Predicated region
    $region6: #{tpu_custom_call.1} parent=1 // pred_check
      _
    $region7: #{tpu_custom_call.1} parent=1 // pred_check_branch
      %25 = sbr.rel (0) target = $region9
    $region8: #{tpu_custom_call.1} parent=1 // pred_region
      %27 = vsyncadd [#allocation6], 0
      %s28 = sshll.u32 %s1, 4
      %s29 = int_to_ptr.hbm [resolvable:$true] %s28
      %s30 = sshll.u32 [#allocation5], 4
      %s31 = int_to_ptr.vmem [resolvable:$true] %s30
      %36 = dma.hbm_to_vmem [thread:$0]  %s29, 512, %s31, [#allocation6], 128, 128, 8
    $region9: #{tpu_custom_call.1} parent=1 // pred_fallthru
      _
    // Predicated region
    $region10: #{tpu_custom_call.1} parent=1 // pred_check
      _
    $region11: #{tpu_custom_call.1} parent=1 // pred_check_branch
      %38 = sbr.rel (0) target = $region13
    $region12: #{tpu_custom_call.1} parent=1 // pred_region
      _
    $region13: #{tpu_custom_call.1} parent=1 // pred_fallthru
      _
    // Predicated region
    $region14: #{tpu_custom_call.1} parent=1 // pred_check
      _
    $region15: #{tpu_custom_call.1} parent=1 // pred_check_branch
      %40 = sbr.rel (0) target = $region17
    $region16: #{tpu_custom_call.1} parent=1 // pred_region
      %42 = dma.done [#allocation3], 256
    $region17: #{tpu_custom_call.1} parent=1 // pred_fallthru
      _
    // Predicated region
    $region18: #{tpu_custom_call.1} parent=1 // pred_check
      _
    $region19: #{tpu_custom_call.1} parent=1 // pred_check_branch
      %44 = sbr.rel (0) target = $region21
    $region20: #{tpu_custom_call.1} parent=1 // pred_region
      %46 = dma.done [#allocation6], 512
    $region21: #{tpu_custom_call.1} parent=1 // pred_fallthru
      _
    %v47 = vld [vmem:[#allocation2] sm:$0xff]
    %v48 = vld [vmem:[#allocation2 + $0x8] sm:$0xff]
    %v49 = vld [vmem:[#allocation5] sm:$0xff]
    %v50 = vld [vmem:[#allocation5 + $0x8] sm:$0xff]
    %v51 = vld [vmem:[#allocation5 + $0x10] sm:$0xff]
    %v52 = vld [vmem:[#allocation5 + $0x18] sm:$0xff]
    %v53 = vld [vmem:[%s2] sm:$0x1]
    %v55 = vperm.slane %v53, 0
    %vm57 = vcmask 261120
    %v59 = vsel %vm57, %v47, 0
    %v62 = vsel %vm57, %v48, 0
    %64 = vmatpush.msra.mxu0 0.0
    %65 = vmatpush.msra.mxu0 0.0
    %66 = vmatpush.msra.mxu0 0.0
    %67 = vmatpush.msra.mxu0 0.0
    %68 = vmatpush.msra.mxu0 0.0
    %69 = vmatpush.msra.mxu0 0.0
    %70 = vmatpush.msra.mxu0 0.0
    %71 = vmatpush.msra.mxu0 0.0
    %72 = vmatpush.msra.mxu0 0.0
    %73 = vmatpush.msra.mxu0 0.0
    %74 = vmatpush.msra.mxu0 0.0
    %75 = vmatpush.msra.mxu0 0.0
    %76 = vmatpush.msra.mxu0 %v52
    %77 = vmatpush.msra.mxu0 %v51
    %78 = vmatpush.msra.mxu0 %v50
    %79 = vmatpush.msra.mxu0 %v49
    %80 = vmatmul.f32.gmra.mxu0 %v59
    %v81 = vpop.f32.mrf.mxu0
    %v82 = vadd.f32 %v55, %v81
    %83 = vmatmul.f32.gmra.mxu0 %v62
    %v84 = vpop.f32.mrf.mxu0
    %v85 = vadd.f32 %v55, %v84
    %86 = vdwg.mxu0
    %vm87 = vcmask 785408
    %88 = vst.msk [vmem:[#allocation7] sm:$0xff] %vm87, %v82
    %89 = vst.msk [vmem:[#allocation7 + $0x8] sm:$0xff] %vm87, %v85
    // Predicated region
    $region22: #{tpu_custom_call.1} parent=1 // pred_check
      _
    $region23: #{tpu_custom_call.1} parent=1 // pred_check_branch
      %91 = sbr.rel (0) target = $region25
    $region24: #{tpu_custom_call.1} parent=1 // pred_region
      %93 = vsyncadd [#allocation4], 0
      %s94 = sshll.u32 [#allocation7], 4
      %s95 = int_to_ptr.vmem [resolvable:$true] %s94
      %s96 = sshll.u32 %s3, 4
      %s97 = int_to_ptr.hbm [resolvable:$true] %s96
      %102 = dma.vmem_to_hbm [thread:$0]  %s95, 256, %s97, [#allocation4], 128, 128, 8
    $region25: #{tpu_custom_call.1} parent=1 // pred_fallthru
      _
    // Predicated region
    $region26: #{tpu_custom_call.1} parent=1 // pred_check
      _
    $region27: #{tpu_custom_call.1} parent=1 // pred_check_branch
      %104 = sbr.rel (0) target = $region29
    $region28: #{tpu_custom_call.1} parent=1 // pred_region
      %106 = dma.done [#allocation4], 256
    $region29: #{tpu_custom_call.1} parent=1 // pred_fallthru
      _
    %107 = vsyncpa [#allocation3], 1
    %108 = vsyncpa [#allocation6], 1
    %109 = vsyncpa [#allocation4], 1

</llo_original>
